<compile_context>
chip_gen: v7x
topology: tpu7x:2x2x1
jax: 0.10.0
libtpu: 0.0.40
codegen_flags: <defaults>
</compile_context>

<pallas_src>
import functools

import jax
import jax.numpy as jnp
from jax.experimental import pallas as pl
from jax.experimental.pallas import tpu as pltpu

METRIC_KEYS = [
    'acc', 'accuracy', 'precision', 'recall', 'f1', 'mae', 'mape', 'smape',
    'ppl', 'bleu', 'sen_bleu', 'sacre_bleu', 'google_bleu', 'chrf2', 'ter',
    'rouge1', 'rouge2', 'rougeL', 'rougeLsum', 'meteor'
]
NUM_METRICS = len(METRIC_KEYS)  # 20
_LANE = 128


def _avg_kernel(results_ref, out_ref, *, inv_count):
    # results_ref: VMEM (num_adds, 128) f32 -- one row per add() call, lane-dense
    # out_ref:     VMEM (1, 128) f32        -- averaged metrics (padded)
    acc = jnp.sum(results_ref[...], axis=0, keepdims=True)
    out_ref[...] = acc * inv_count          # multiply by reciprocal, no f32 divide


def _avg_kernel_tiled(results_ref, out_ref, acc_ref, *, inv_count):
    # Tiled reduction over the num_adds axis for large / streaming accumulation.
    @pl.when(pl.program_id(0) == 0)
    def _():
        acc_ref[...] = jnp.zeros_like(acc_ref)

    acc_ref[...] += jnp.sum(results_ref[...], axis=0, keepdims=True)

    @pl.when(pl.program_id(0) == pl.num_programs(0) - 1)
    def _():
        out_ref[...] = acc_ref[...] * inv_count


def metrics_value_forward(results: jax.Array, count: int, *,
                          row_tile: int = 512) -> jax.Array:
    """results: (num_adds, NUM_METRICS) f32; returns (1, NUM_METRICS) f32.

    Semantics: repeated MetricsValue.add(row) followed by forward()
    (= average(count)).
    """
    num_adds, num_metrics = results.shape
    # count is a Python int at call time -> compile-time constant reciprocal.
    # count == 0 raises ZeroDivisionError here, matching the module's failure
    # mode (forward() before any add()).
    inv_count = 1.0 / float(count)

    # Lane-dense layout: pad the metrics axis to a multiple of 128 lanes so the
    # output store is an unmasked full-vreg vst (zero padding is harmless).
    lanes = max(_LANE, pl.cdiv(num_metrics, _LANE) * _LANE)
    if lanes != num_metrics:
        results = jnp.pad(results, ((0, 0), (0, lanes - num_metrics)))
    results = results.astype(jnp.float32)

    if num_adds <= row_tile:
        # Tiny problem: no grid, no scalar prefetch -- single VMEM-resident block.
        out = pl.pallas_call(
            functools.partial(_avg_kernel, inv_count=inv_count),
            out_shape=jax.ShapeDtypeStruct((1, lanes), jnp.float32),
            in_specs=[pl.BlockSpec(memory_space=pltpu.MemorySpace.VMEM)],
            out_specs=pl.BlockSpec(memory_space=pltpu.MemorySpace.VMEM),
        )(results)
    else:
        # Large num_adds: tile the reduction axis to stay within scoped VMEM
        # (v5e 16 MiB / v7x 32 MiB defaults) while keeping the pipeline fed.
        n_tiles = pl.cdiv(num_adds, row_tile)
        padded_rows = n_tiles * row_tile
        if padded_rows != num_adds:
            # zero rows contribute nothing to the sum
            results = jnp.pad(results, ((0, padded_rows - num_adds), (0, 0)))
        out = pl.pallas_call(
            functools.partial(_avg_kernel_tiled, inv_count=inv_count),
            out_shape=jax.ShapeDtypeStruct((1, lanes), jnp.float32),
            grid=(n_tiles,),
            in_specs=[pl.BlockSpec((row_tile, lanes), lambda i: (i, 0))],
            out_specs=pl.BlockSpec((1, lanes), lambda i: (0, 0)),
            scratch_shapes=[pltpu.VMEM((1, lanes), jnp.float32)],
            compiler_params=pltpu.CompilerParams(
                dimension_semantics=("arbitrary",)),
        )(results)

    return out[:, :num_metrics]


def _reference(results: jax.Array, count: int) -> jax.Array:
    # Pure-JAX replica of MetricsValue: accumulate each add() row, then average.
    return (jnp.sum(results.astype(jnp.float32), axis=0, keepdims=True) / count)


if __name__ == "__main__":
    key = jax.random.PRNGKey(0)

    # Small case (matches the module's typical use: a handful of add() calls).
    num_adds = 8
    results = jax.random.uniform(key, (num_adds, NUM_METRICS), dtype=jnp.float32)
    out = jax.block_until_ready(metrics_value_forward(results, num_adds))
    ref = _reference(results, num_adds)
    assert out.shape == (1, NUM_METRICS)
    assert jnp.allclose(out, ref, rtol=1e-6, atol=1e-6), (out, ref)

    # Larger case exercises the tiled-reduction path.
    key2 = jax.random.PRNGKey(1)
    num_adds_big = 1050
    results_big = jax.random.uniform(
        key2, (num_adds_big, NUM_METRICS), dtype=jnp.float32)
    out_big = jax.block_until_ready(
        metrics_value_forward(results_big, num_adds_big, row_tile=512))
    ref_big = _reference(results_big, num_adds_big)
    assert out_big.shape == (1, NUM_METRICS)
    assert jnp.allclose(out_big, ref_big, rtol=1e-5, atol=1e-5), (out_big, ref_big)

    # TODO(synk): string-valued metrics in metrics_dict are skipped in the
    # original module; they have no tensor representation so are not modeled.
    print("KERNEL_OK")
</pallas_src>

<mosaic_0001>
module attributes {stable_mosaic.version = 11 : i64} {
  func.func @_avg_kernel(%arg0: memref<8x128xf32, #tpu.memory_space<vmem>>, %arg1: memref<1x128xf32, #tpu.memory_space<vmem>>) attributes {dimension_semantics = [], scalar_prefetch = 0 : i64, scratch_operands = 0 : i64, tpu.core_type = #tpu.core_type<tc>} {
    %c0 = arith.constant 0 : index
    %c0_0 = arith.constant 0 : index
    %0 = vector.load %arg0[%c0, %c0_0] : memref<8x128xf32, #tpu.memory_space<vmem>>, vector<8x128xf32>
    %cst = arith.constant dense<0.000000e+00> : vector<128xf32>
    %1 = vector.multi_reduction <add>, %0, %cst [0] : vector<8x128xf32> to vector<128xf32>
    %2 = vector.shape_cast %1 : vector<128xf32> to vector<1x128xf32>
    %cst_1 = arith.constant 1.250000e-01 : f32
    %3 = vector.broadcast %cst_1 : f32 to vector<1x128xf32>
    %4 = arith.mulf %2, %3 : vector<1x128xf32>
    %c0_2 = arith.constant 0 : index
    %c0_3 = arith.constant 0 : index
    %5 = vector.load %arg1[%c0_2, %c0_3] : memref<1x128xf32, #tpu.memory_space<vmem>>, vector<1x128xf32>
    tpu.vector_store %arg1[%c0_2, %c0_3], %4 {strides = array<i32>} : memref<1x128xf32, #tpu.memory_space<vmem>>, vector<1x128xf32>,
    return
  }
}

</mosaic_0001>

<llo_original>
// kernel: tpu_custom_call.1
$region0: #{tpu_custom_call.1}
  #allocation0 [shape = 'u32[]', space=smem, size = 0x4, offset = 0x4, fixed_abs, tag = 'smem constant byte address 0x4 - core index']
  #allocation1 [shape = 'u32[144,128]{1,0:T(1,128)}', space=vmem, size = 0x12000, scoped, tag = 'internal scratch']
  %s0 = inlined_call_operand.hbm [shape: f32[8,128], index: 0, kind: input, shape index: {}]
  %s1 = inlined_call_operand.hbm [shape: f32[1,128], index: 1, kind: output, shape index: {}]
  %s2 = sld [smem:[#allocation0]]
  $region18: #{tpu_custom_call.1} parent=0
    _
  %s4 = ssub.s32 1, %s2
  %s5 = scalar_select 0, %s4, %s2
  $region1: #{tpu_custom_call.1} parent=0
    #allocation2 [shape = 'u8[4096]{0}', space=vmem, size = 0x1000, scoped, tag = 'input window, operand 0, single buffered']
    #allocation3 [shape = 's32[1]{0}', space=sflag, size = 0x4, scoped, tag = 'scoped memory for tpu_custom_call.1']
    #allocation4 [shape = 's32[1]{0}', space=sflag, size = 0x4, scoped, tag = 'scoped memory for tpu_custom_call.1']
    #allocation5 [shape = 'u8[512]{0}', space=vmem, size = 0x400, scoped, tag = 'output window, operand 0, single buffered']
    %6 = vsyncpa [#allocation3], 0
    %7 = vsyncpa [#allocation4], 0
    // Predicated region
    $region2: #{tpu_custom_call.1} parent=1 // pred_check
      _
    $region3: #{tpu_custom_call.1} parent=1 // pred_check_branch
      %9 = sbr.rel (0) target = $region5
    $region4: #{tpu_custom_call.1} parent=1 // pred_region
      %s11 = ssub.s32 128, 128
      %12 = vsyncadd [#allocation3], %s11
      %s14 = sshll.u32 [#allocation2], 4
      %s15 = int_to_ptr.vmem [resolvable:$true] %s14
      %17 = dma.hbm_to_vmem [thread:$0]  %s0, 128, %s15, [#allocation3]
    $region5: #{tpu_custom_call.1} parent=1 // pred_fallthru
      _
    // Predicated region
    $region6: #{tpu_custom_call.1} parent=1 // pred_check
      _
    $region7: #{tpu_custom_call.1} parent=1 // pred_check_branch
      %19 = sbr.rel (0) target = $region9
    $region8: #{tpu_custom_call.1} parent=1 // pred_region
      %20 = dma.done [#allocation3], 128
    $region9: #{tpu_custom_call.1} parent=1 // pred_fallthru
      _
    %v21 = vld [vmem:[#allocation2] sm:$0xff]
    %v22 = vrot.slane %v21, 4
    %v23 = vadd.f32 %v21, %v22
    %v24 = vrot.slane %v23, 2
    %v25 = vadd.f32 %v23, %v24
    %v26 = vrot.slane %v25, 1
    %v27 = vadd.f32 %v25, %v26
    %v28 = vmul.f32 %v27, 0.125
    %29 = vst [vmem:[#allocation5] sm:$0x1] %v28
    // Predicated region
    $region10: #{tpu_custom_call.1} parent=1 // pred_check
      _
    $region11: #{tpu_custom_call.1} parent=1 // pred_check_branch
      %31 = sbr.rel (0) target = $region13
    $region12: #{tpu_custom_call.1} parent=1 // pred_region
      %s33 = ssub.s32 16, 16
      %34 = vsyncadd [#allocation4], %s33
      %s36 = sshll.u32 [#allocation5], 4
      %s37 = int_to_ptr.vmem [resolvable:$true] %s36
      %39 = dma.vmem_to_hbm [thread:$0]  %s37, 16, %s1, [#allocation4]
    $region13: #{tpu_custom_call.1} parent=1 // pred_fallthru
      _
    // Predicated region
    $region14: #{tpu_custom_call.1} parent=1 // pred_check
      _
    $region15: #{tpu_custom_call.1} parent=1 // pred_check_branch
      %41 = sbr.rel (0) target = $region17
    $region16: #{tpu_custom_call.1} parent=1 // pred_region
      %42 = dma.done [#allocation4], 16
    $region17: #{tpu_custom_call.1} parent=1 // pred_fallthru
      _
    %43 = vsyncpa [#allocation3], 1
    %44 = vsyncpa [#allocation4], 1

</llo_original>
